<compile_context>
chip_gen: v5e
topology: v5e:2x2
jax: 0.10.0
libtpu: 0.0.40
codegen_flags: <defaults>
</compile_context>

<pallas_src>
import functools

import jax
import jax.numpy as jnp
from jax.experimental import pallas as pl
from jax.experimental.pallas import tpu as pltpu

LANE = 128
SLAB_LANES = 24  # 16 (W2) + 2 (W1 cols) + 1 (b1) + 1 (b2) + 1 (w3) + 1 (b3) + pad


def _round_up(n, m):
    return ((n + m - 1) // m) * m


def _cdiv(a, b):
    return -(-a // b)


def _device_kind():
    try:
        return jax.devices()[0].device_kind.lower()
    except Exception:
        return ""


def _is_v7x(kind=None):
    kind = _device_kind() if kind is None else kind
    return ("v7" in kind) or ("tpu7" in kind)


def _softplus(x, use_bf16):
    # Numerically stable softplus: max(x,0) + log1p(exp(-|x|)).
    # Optionally run the transcendental part in bf16 (v6e/v7x EUP), keeping the
    # max(x,0) accumulation in f32.
    neg_abs = -jnp.abs(x)
    if use_bf16:
        t = jnp.log1p(jnp.exp(neg_abs.astype(jnp.bfloat16))).astype(jnp.float32)
    else:
        t = jnp.log1p(jnp.exp(neg_abs))
    return jnp.maximum(x, 0.0) + t


def mlp_kernel(x_ref, p_ref, o_ref, *, use_bf16):
    x = x_ref[...]            # [2, TB]   (batch on lanes)
    p = p_ref[...]            # [16, SLAB_LANES] packed params (resident)

    w2 = p[:, 0:16]           # [16, 16]  torch [out, in]
    w1c0 = p[:, 16:17]        # [16, 1]
    w1c1 = p[:, 17:18]        # [16, 1]
    b1 = p[:, 18:19]          # [16, 1]
    b2 = p[:, 19:20]          # [16, 1]
    w3 = p[:, 20:21]          # [16, 1]
    b3 = p[0:1, 21:22]        # [1, 1]

    # Layer 1 (2 -> 16): K=2, two VPU broadcast FMAs instead of the MXU.
    h1 = w1c0 * x[0:1, :] + w1c1 * x[1:2, :] + b1          # [16, TB]
    h1 = _softplus(h1, use_bf16)

    # Layer 2 (16 -> 16): the only matmul worth the MXU (W2 @ H1, feature-major).
    if use_bf16:
        h2 = jnp.dot(w2.astype(jnp.bfloat16), h1.astype(jnp.bfloat16),
                     preferred_element_type=jnp.float32) + b2
    else:
        h2 = jnp.dot(w2, h1, preferred_element_type=jnp.float32) + b2
    h2 = _softplus(h2, use_bf16)

    # Layer 3 (16 -> 1): N=1, elementwise multiply + sublane reduce (no MXU).
    out = jnp.sum(w3 * h2, axis=0, keepdims=True) + b3      # [1, TB]
    o_ref[...] = out.astype(o_ref.dtype)


def _choose_tiling(batch, max_tile, min_tiles):
    """Pick (tile_lanes, padded_batch) with <=~128 padded lanes per tile."""
    b128 = _round_up(max(batch, 1), LANE)
    n = _cdiv(b128, max_tile)
    # v7x: make sure the "parallel" grid axis has >=2 steps when B is big
    # enough that each core gets at least one full 128-lane chunk of real data.
    if min_tiles > 1 and b128 >= min_tiles * LANE:
        n = max(n, min_tiles)
    tb = _round_up(_cdiv(batch, n), LANE)
    return tb, n * tb


def _vmem_limit_bytes(tb):
    # x and out tiles pad to 8 sublanes in VMEM and are double-buffered; the
    # [16, tb] f32 h1/h2 intermediates plus softplus temporaries live alongside.
    need = 2 * (2 * 8 * tb * 4)       # x + out, 2 buffers each, 8-sublane padded
    need += 4 * (16 * tb * 4)         # h1, h2 + ~2 compiler temporaries
    need += 1 << 20                   # params slab + slack
    # Floor keeps the compiler comfortable; cap stays under v7x's 64 MiB VMEM.
    return min(max(need, 32 << 20), 48 << 20)


def binary_classification_forward_fm(x_fm, params_slab, *, max_tile=32768,
                                     min_tiles=None, use_bf16=False):
    """Feature-major forward: x_fm is [2, B] float32, returns [1, B] float32.

    Use this entry point when the data is already feature-major to avoid the
    wrapper transpose/reshape HBM passes.
    """
    B = x_fm.shape[1]
    if min_tiles is None:
        min_tiles = 2 if _is_v7x() else 1
    max_tile = _round_up(max(max_tile, LANE), LANE)
    tb, b_pad = _choose_tiling(B, max_tile, min_tiles)

    x_p = x_fm.astype(jnp.float32)
    if b_pad != B:
        x_p = jnp.pad(x_p, ((0, 0), (0, b_pad - B)))

    kernel = functools.partial(mlp_kernel, use_bf16=use_bf16)
    out = pl.pallas_call(
        kernel,
        out_shape=jax.ShapeDtypeStruct((1, b_pad), jnp.float32),
        grid=(b_pad // tb,),
        in_specs=[
            pl.BlockSpec((2, tb), lambda i: (0, i)),                 # x tile, streamed
            pl.BlockSpec(params_slab.shape, lambda i: (0, 0)),       # resident params
        ],
        out_specs=pl.BlockSpec((1, tb), lambda i: (0, i)),           # lane-dense out
        compiler_params=pltpu.CompilerParams(
            dimension_semantics=("parallel",),                       # megacore on v7x
            vmem_limit_bytes=_vmem_limit_bytes(tb)),
    )(x_p, params_slab)

    return out[:, :B]


def binary_classification_forward(x, params_slab, **kwargs):
    """x: [B, 2] float32. Returns [B, 1] float32 (same as the PyTorch module)."""
    B = x.shape[0]
    out_fm = binary_classification_forward_fm(x.T, params_slab, **kwargs)
    return out_fm.reshape(B, 1) if False else out_fm[0, :].reshape(B, 1)


def init_params(key):
    """PyTorch nn.Linear-style init: W ~ U(-1/sqrt(fan_in), +1/sqrt(fan_in)),
    shapes [out, in] / [out] (torch layout)."""
    def linear(key, fan_in, fan_out):
        kw, kb = jax.random.split(key)
        bound = 1.0 / float(fan_in) ** 0.5
        w = jax.random.uniform(kw, (fan_out, fan_in), jnp.float32, -bound, bound)
        b = jax.random.uniform(kb, (fan_out,), jnp.float32, -bound, bound)
        return w, b

    k1, k2, k3 = jax.random.split(key, 3)
    return (linear(k1, 2, 16), linear(k2, 16, 16), linear(k3, 16, 1))


def pack_params(torch_params):
    """Pack all PyTorch-layout params into one [16, SLAB_LANES] resident slab.

    Lanes: 0:16 = W2 ([out,in]), 16/17 = W1 columns, 18 = b1, 19 = b2,
    20 = w3 (as a column), 21 = b3 at row 0, rest zero padding.
    """
    (w1, b1), (w2, b2), (w3, b3) = torch_params
    slab = jnp.zeros((16, SLAB_LANES), jnp.float32)
    slab = slab.at[:, 0:16].set(w2.astype(jnp.float32))
    slab = slab.at[:, 16].set(w1[:, 0].astype(jnp.float32))
    slab = slab.at[:, 17].set(w1[:, 1].astype(jnp.float32))
    slab = slab.at[:, 18].set(b1.astype(jnp.float32))
    slab = slab.at[:, 19].set(b2.astype(jnp.float32))
    slab = slab.at[:, 20].set(w3[0, :].astype(jnp.float32))
    slab = slab.at[0, 21].set(b3[0].astype(jnp.float32))
    return slab


def reference_forward(x, torch_params):
    (w1, b1), (w2, b2), (w3, b3) = torch_params
    h1 = jax.nn.softplus(x @ w1.T + b1)
    h2 = jax.nn.softplus(h1 @ w2.T + b2)
    return h2 @ w3.T + b3


if __name__ == "__main__":
    key = jax.random.PRNGKey(0)
    k_params, k_x1, k_x2 = jax.random.split(key, 3)

    torch_params = init_params(k_params)
    slab = pack_params(torch_params)

    # makeMoons-style input: [batch, 2] features.
    x = jax.random.normal(k_x1, (8, 2), dtype=jnp.float32)
    out = jax.block_until_ready(binary_classification_forward(x, slab))
    ref = reference_forward(x, torch_params)
    assert out.shape == (8, 1), out.shape
    assert jnp.allclose(out, ref, atol=1e-4, rtol=1e-4), (out, ref)

    # Feature-major entry point (no wrapper transpose/reshape passes).
    out_fm = jax.block_until_ready(binary_classification_forward_fm(x.T, slab))
    assert out_fm.shape == (1, 8), out_fm.shape
    assert jnp.allclose(out_fm[0], ref[:, 0], atol=1e-4, rtol=1e-4)

    # Exercise the multi-tile grid path: padding, pad-waste-aware tb selection,
    # forced >=2 grid steps ("parallel" axis actually splits work).
    x2 = jax.random.normal(k_x2, (300, 2), dtype=jnp.float32)
    out2 = jax.block_until_ready(
        binary_classification_forward(x2, slab, max_tile=128, min_tiles=2))
    ref2 = reference_forward(x2, torch_params)
    assert out2.shape == (300, 1), out2.shape
    assert jnp.allclose(out2, ref2, atol=1e-4, rtol=1e-4)

    # Optional bf16 EUP/MXU path: only meaningful (and only tested) on v6e/v7x;
    # tolerance relaxed because bf16 rounding exceeds 1e-4.
    kind = _device_kind()
    if ("v6" in kind) or _is_v7x(kind):
        out_bf = jax.block_until_ready(
            binary_classification_forward(x2, slab, use_bf16=True))
        assert out_bf.shape == (300, 1), out_bf.shape
        assert jnp.allclose(out_bf, ref2, atol=5e-2, rtol=5e-2)

    print("KERNEL_OK")
</pallas_src>

<mosaic_0001>
module attributes {stable_mosaic.version = 11 : i64} {
  func.func @mlp_kernel(%arg0: i32, %arg1: memref<2x128xf32, #tpu.memory_space<vmem>>, %arg2: memref<16x24xf32, #tpu.memory_space<vmem>>, %arg3: memref<1x128xf32, #tpu.memory_space<vmem>>) attributes {dimension_semantics = [#tpu.dimension_semantics<parallel>], iteration_bounds = array<i64: 1>, scalar_prefetch = 0 : i64, scratch_operands = 0 : i64, tpu.core_type = #tpu.core_type<tc>, window_params = [{transform_indices = @transform_0, window_bounds = array<i64: 2, 128>}, {pipeline_mode = #tpu.pipeline_mode<synchronous>, transform_indices = @transform_1, window_bounds = array<i64: 16, 24>}, {transform_indices = @transform_2, window_bounds = array<i64: 1, 128>}]} {
    %c0 = arith.constant 0 : index
    %c0_0 = arith.constant 0 : index
    %0 = vector.load %arg1[%c0, %c0_0] : memref<2x128xf32, #tpu.memory_space<vmem>>, vector<2x128xf32>
    %c0_1 = arith.constant 0 : index
    %c0_2 = arith.constant 0 : index
    %1 = vector.load %arg2[%c0_1, %c0_2] : memref<16x24xf32, #tpu.memory_space<vmem>>, vector<16x24xf32>
    %2 = vector.extract_strided_slice %1 {offsets = [0, 0], sizes = [16, 16], strides = [1, 1]} : vector<16x24xf32> to vector<16x16xf32>
    %3 = vector.extract_strided_slice %1 {offsets = [0, 16], sizes = [16, 1], strides = [1, 1]} : vector<16x24xf32> to vector<16x1xf32>
    %4 = vector.extract_strided_slice %1 {offsets = [0, 17], sizes = [16, 1], strides = [1, 1]} : vector<16x24xf32> to vector<16x1xf32>
    %5 = vector.extract_strided_slice %1 {offsets = [0, 18], sizes = [16, 1], strides = [1, 1]} : vector<16x24xf32> to vector<16x1xf32>
    %6 = vector.extract_strided_slice %1 {offsets = [0, 19], sizes = [16, 1], strides = [1, 1]} : vector<16x24xf32> to vector<16x1xf32>
    %7 = vector.extract_strided_slice %1 {offsets = [0, 20], sizes = [16, 1], strides = [1, 1]} : vector<16x24xf32> to vector<16x1xf32>
    %8 = vector.extract_strided_slice %1 {offsets = [0, 21], sizes = [1, 1], strides = [1, 1]} : vector<16x24xf32> to vector<1x1xf32>
    %9 = vector.extract_strided_slice %0 {offsets = [0, 0], sizes = [1, 128], strides = [1, 1]} : vector<2x128xf32> to vector<1x128xf32>
    %10 = vector.broadcast %3 : vector<16x1xf32> to vector<16x128xf32>
    %11 = vector.broadcast %9 : vector<1x128xf32> to vector<16x128xf32>
    %12 = arith.mulf %10, %11 : vector<16x128xf32>
    %13 = vector.extract_strided_slice %0 {offsets = [1, 0], sizes = [1, 128], strides = [1, 1]} : vector<2x128xf32> to vector<1x128xf32>
    %14 = vector.broadcast %4 : vector<16x1xf32> to vector<16x128xf32>
    %15 = vector.broadcast %13 : vector<1x128xf32> to vector<16x128xf32>
    %16 = arith.mulf %14, %15 : vector<16x128xf32>
    %17 = arith.addf %12, %16 : vector<16x128xf32>
    %18 = vector.broadcast %5 : vector<16x1xf32> to vector<16x128xf32>
    %19 = arith.addf %17, %18 : vector<16x128xf32>
    %20 = math.absf %19 : vector<16x128xf32>
    %cst = arith.constant 0.000000e+00 : f32
    %21 = vector.broadcast %cst : f32 to vector<16x128xf32>
    %22 = arith.subf %21, %20 : vector<16x128xf32>
    %23 = math.exp %22 : vector<16x128xf32>
    %24 = math.log1p %23 : vector<16x128xf32>
    %cst_3 = arith.constant 0.000000e+00 : f32
    %25 = vector.broadcast %cst_3 : f32 to vector<16x128xf32>
    %26 = arith.maximumf %19, %25 : vector<16x128xf32>
    %27 = arith.addf %26, %24 : vector<16x128xf32>
    %cst_4 = arith.constant dense<0.000000e+00> : vector<16x128xf32>
    %28 = tpu.matmul %2, %27, %cst_4 {dimension_numbers = #tpu.dot_dimension_numbers<[1], [0], [0], [1], [0, 0, 1, 1], [], []>} : vector<16x16xf32>, vector<16x128xf32>, vector<16x128xf32> -> vector<16x128xf32>
    %29 = vector.broadcast %6 : vector<16x1xf32> to vector<16x128xf32>
    %30 = arith.addf %28, %29 : vector<16x128xf32>
    %31 = math.absf %30 : vector<16x128xf32>
    %cst_5 = arith.constant 0.000000e+00 : f32
    %32 = vector.broadcast %cst_5 : f32 to vector<16x128xf32>
    %33 = arith.subf %32, %31 : vector<16x128xf32>
    %34 = math.exp %33 : vector<16x128xf32>
    %35 = math.log1p %34 : vector<16x128xf32>
    %cst_6 = arith.constant 0.000000e+00 : f32
    %36 = vector.broadcast %cst_6 : f32 to vector<16x128xf32>
    %37 = arith.maximumf %30, %36 : vector<16x128xf32>
    %38 = arith.addf %37, %35 : vector<16x128xf32>
    %39 = vector.broadcast %7 : vector<16x1xf32> to vector<16x128xf32>
    %40 = arith.mulf %39, %38 : vector<16x128xf32>
    %cst_7 = arith.constant dense<0.000000e+00> : vector<128xf32>
    %41 = vector.multi_reduction <add>, %40, %cst_7 [0] : vector<16x128xf32> to vector<128xf32>
    %42 = vector.shape_cast %41 : vector<128xf32> to vector<1x128xf32>
    %43 = vector.broadcast %8 : vector<1x1xf32> to vector<1x128xf32>
    %44 = arith.addf %42, %43 : vector<1x128xf32>
    %c0_8 = arith.constant 0 : index
    %c0_9 = arith.constant 0 : index
    %45 = vector.load %arg3[%c0_8, %c0_9] : memref<1x128xf32, #tpu.memory_space<vmem>>, vector<1x128xf32>
    tpu.vector_store %arg3[%c0_8, %c0_9], %44 {strides = array<i32>} : memref<1x128xf32, #tpu.memory_space<vmem>>, vector<1x128xf32>,
    return
  }
  func.func @transform_0(%arg0: i32) -> (i32, i32) {
    %c0_i32 = arith.constant 0 : i32
    %c0_i32_0 = arith.constant 0 : i32
    return %c0_i32, %arg0 : i32, i32
  }
  func.func @transform_1(%arg0: i32) -> (i32, i32) {
    %c0_i32 = arith.constant 0 : i32
    %c0_i32_0 = arith.constant 0 : i32
    %c0_i32_1 = arith.constant 0 : i32
    return %c0_i32, %c0_i32_0 : i32, i32
  }
  func.func @transform_2(%arg0: i32) -> (i32, i32) {
    %c0_i32 = arith.constant 0 : i32
    %c0_i32_0 = arith.constant 0 : i32
    return %c0_i32, %arg0 : i32, i32
  }
}

</mosaic_0001>

<llo_original>
// kernel: tpu_custom_call.1
$region0: #{tpu_custom_call.1}
  #allocation0 [shape = 'u32[]', space=smem, size = 0x4, offset = 0x4, fixed_abs, tag = 'smem constant byte address 0x4 - core index']
  #allocation1 [shape = 'u32[72,128]{1,0:T(1,128)}', space=vmem, size = 0x9000, scoped, tag = 'internal scratch']
  %s0 = inlined_call_operand.hbm [shape: f32[2,128], index: 0, kind: input, shape index: {}]
  %s1 = inlined_call_operand.hbm [shape: f32[16,24], index: 1, kind: input, shape index: {}]
  %s2 = inlined_call_operand.hbm [shape: f32[1,128], index: 2, kind: output, shape index: {}]
  %s3 = sld [smem:[#allocation0]]
  $region26: #{tpu_custom_call.1} parent=0
    _
  %s5 = ssub.s32 1, %s3
  %s6 = scalar_select 0, %s5, %s3
  $region1: #{tpu_custom_call.1} parent=0
    #allocation2 [shape = 'u8[1024]{0}', space=vmem, size = 0x400, scoped, tag = 'input window, operand 0, single buffered']
    #allocation3 [shape = 's32[1]{0}', space=sflag, size = 0x4, scoped, tag = 'scoped memory for tpu_custom_call.1']
    #allocation4 [shape = 's32[1]{0}', space=sflag, size = 0x4, scoped, tag = 'scoped memory for tpu_custom_call.1']
    #allocation5 [shape = 'u8[8192]{0}', space=vmem, size = 0x2000, scoped, tag = 'input window, operand 1, single buffered']
    #allocation6 [shape = 's32[1]{0}', space=sflag, size = 0x4, scoped, tag = 'scoped memory for tpu_custom_call.1']
    #allocation7 [shape = 'u8[512]{0}', space=vmem, size = 0x400, scoped, tag = 'output window, operand 0, single buffered']
    %7 = vsyncpa [#allocation3], 0
    %8 = vsyncpa [#allocation6], 0
    %9 = vsyncpa [#allocation4], 0
    // Predicated region
    $region2: #{tpu_custom_call.1} parent=1 // pred_check
      _
    $region3: #{tpu_custom_call.1} parent=1 // pred_check_branch
      %11 = sbr.rel (0) target = $region5
    $region4: #{tpu_custom_call.1} parent=1 // pred_region
      %13 = vsyncadd [#allocation3], 0
      %s15 = sshll.u32 %s0, 4
      %s16 = int_to_ptr.hbm [resolvable:$true] %s15
      %s17 = sshll.u32 [#allocation2], 4
      %s18 = int_to_ptr.vmem [resolvable:$true] %s17
      %20 = dma.hbm_to_vmem [thread:$0]  %s16, 32, %s18, [#allocation3]
    $region5: #{tpu_custom_call.1} parent=1 // pred_fallthru
      _
    // Predicated region
    $region6: #{tpu_custom_call.1} parent=1 // pred_check
      _
    $region7: #{tpu_custom_call.1} parent=1 // pred_check_branch
      %22 = sbr.rel (0) target = $region9
    $region8: #{tpu_custom_call.1} parent=1 // pred_region
      %24 = vsyncadd [#allocation6], 0
      %s25 = sshll.u32 %s1, 4
      %s26 = int_to_ptr.hbm [resolvable:$true] %s25
      %s27 = sshll.u32 [#allocation5], 4
      %s28 = int_to_ptr.vmem [resolvable:$true] %s27
      %33 = dma.hbm_to_vmem [thread:$0]  %s26, 256, %s28, [#allocation6], 128, 128, 8
    $region9: #{tpu_custom_call.1} parent=1 // pred_fallthru
      _
    // Predicated region
    $region10: #{tpu_custom_call.1} parent=1 // pred_check
      _
    $region11: #{tpu_custom_call.1} parent=1 // pred_check_branch
      %35 = sbr.rel (0) target = $region13
    $region12: #{tpu_custom_call.1} parent=1 // pred_region
      %37 = dma.done [#allocation3], 32
    $region13: #{tpu_custom_call.1} parent=1 // pred_fallthru
      _
    // Predicated region
    $region14: #{tpu_custom_call.1} parent=1 // pred_check
      _
    $region15: #{tpu_custom_call.1} parent=1 // pred_check_branch
      %39 = sbr.rel (0) target = $region17
    $region16: #{tpu_custom_call.1} parent=1 // pred_region
      %41 = dma.done [#allocation6], 256
    $region17: #{tpu_custom_call.1} parent=1 // pred_fallthru
      _
    %v42 = vld [vmem:[#allocation2] sm:$0x3]
    %v43 = vld [vmem:[#allocation5] sm:$0xff]
    %v44 = vld [vmem:[#allocation5 + $0x8] sm:$0xff]
    %46 = vset.pattern.permute.xlu0 16
    %47 = vperm.xlu0 %46, %v43
    %v48 = vpop.permute.xlu0 %47
    %51 = vset.pattern.permute.xlu0 16
    %52 = vperm.xlu0 %51, %v44
    %v53 = vpop.permute.xlu0 %52
    %v55 = vperm.slane %v42, 0
    %v56 = vmul.f32 %v48, %v55
    %v57 = vmul.f32 %v53, %v55
    %58 = vset.pattern.permute.xlu0 17
    %59 = vperm.xlu0 %58, %v43
    %v60 = vpop.permute.xlu0 %59
    %62 = vset.pattern.permute.xlu0 17
    %63 = vperm.xlu0 %62, %v44
    %v64 = vpop.permute.xlu0 %63
    %v66 = vperm.slane %v42, 1
    %v67 = vmul.f32 %v60, %v66
    %v68 = vmul.f32 %v64, %v66
    %v69 = vadd.f32 %v56, %v67
    %v70 = vadd.f32 %v57, %v68
    %71 = vset.pattern.permute.xlu0 18
    %72 = vperm.xlu0 %71, %v43
    %v73 = vpop.permute.xlu0 %72
    %75 = vset.pattern.permute.xlu0 18
    %76 = vperm.xlu0 %75, %v44
    %v77 = vpop.permute.xlu0 %76
    %v79 = vadd.f32 %v69, %v73
    %v80 = vadd.f32 %v70, %v77
    %v81 = vand.u32 2147483647, %v79
    %v82 = vand.u32 2147483647, %v80
    %v83 = vsub.f32 0.0, %v81
    %v84 = vsub.f32 0.0, %v82
    %v85 = vmul.f32 %v83, 1.442695
    %v86 = vpow.pop %v85
    %v87 = vmul.f32 %v84, 1.442695
    %v88 = vpow.pop %v87
    %v89 = vadd.f32 %v86, 1.0
    %v90 = vlog2.pop %v89
    %v91 = vmul.f32 %v90, 0.6931472
    %v92 = vmul.f32 -0.5, %v86
    %v93 = vadd.f32 %v92, 1.0
    %v94 = vmul.f32 %v93, %v86
    %v95 = vand.u32 2147483647, %v86
    %vm96 = vcmp.lt.f32.partialorder %v95, 0.0004427343
    %v97 = vsel %vm96, %v94, %v91
    %v98 = vadd.f32 %v88, 1.0
    %v99 = vlog2.pop %v98
    %v100 = vmul.f32 %v99, 0.6931472
    %v101 = vmul.f32 -0.5, %v88
    %v102 = vadd.f32 %v101, 1.0
    %v103 = vmul.f32 %v102, %v88
    %v104 = vand.u32 2147483647, %v88
    %vm105 = vcmp.lt.f32.partialorder %v104, 0.0004427343
    %v106 = vsel %vm105, %v103, %v100
    %v107 = vmax.f32 %v79, 0.0
    %v108 = vmax.f32 %v80, 0.0
    %v109 = vadd.f32 %v107, %v97
    %v110 = vadd.f32 %v108, %v106
    %111 = vset.pattern.permute.xlu0 19
    %112 = vperm.xlu0 %111, %v43
    %v113 = vpop.permute.xlu0 %112
    %115 = vset.pattern.permute.xlu0 19
    %116 = vperm.xlu0 %115, %v44
    %v117 = vpop.permute.xlu0 %116
    %vm119 = vcmask 130048
    %v120 = vsel %vm119, %v43, 0
    %v122 = vsel %vm119, %v44, 0
    %124 = vmatpush.msra.mxu0 0.0
    %125 = vmatpush.msra.mxu0 0.0
    %126 = vmatpush.msra.mxu0 0.0
    %127 = vmatpush.msra.mxu0 0.0
    %128 = vmatpush.msra.mxu0 0.0
    %129 = vmatpush.msra.mxu0 0.0
    %130 = vmatpush.msra.mxu0 0.0
    %131 = vmatpush.msra.mxu0 0.0
    %132 = vmatpush.msra.mxu0 0.0
    %133 = vmatpush.msra.mxu0 0.0
    %134 = vmatpush.msra.mxu0 0.0
    %135 = vmatpush.msra.mxu0 0.0
    %136 = vmatpush.msra.mxu0 0.0
    %137 = vmatpush.msra.mxu0 0.0
    %138 = vmatpush.msra.mxu0 %v110
    %139 = vmatpush.msra.mxu0 %v109
    %140 = vmatmul.f32.gmra.mxu0 %v120
    %v141 = vpop.f32.mrf.mxu0
    %v142 = vadd.f32 %v113, %v141
    %143 = vmatmul.f32.gmra.mxu0 %v122
    %v144 = vpop.f32.mrf.mxu0
    %v145 = vadd.f32 %v117, %v144
    %146 = vdwg.mxu0
    %v147 = vand.u32 2147483647, %v142
    %v148 = vand.u32 2147483647, %v145
    %v149 = vsub.f32 0.0, %v147
    %v150 = vsub.f32 0.0, %v148
    %v151 = vmul.f32 %v149, 1.442695
    %v152 = vpow.pop %v151
    %v153 = vmul.f32 %v150, 1.442695
    %v154 = vpow.pop %v153
    %v155 = vadd.f32 %v152, 1.0
    %v156 = vlog2.pop %v155
    %v157 = vmul.f32 %v156, 0.6931472
    %v158 = vmul.f32 -0.5, %v152
    %v159 = vadd.f32 %v158, 1.0
    %v160 = vmul.f32 %v159, %v152
    %v161 = vand.u32 2147483647, %v152
    %vm162 = vcmp.lt.f32.partialorder %v161, 0.0004427343
    %v163 = vsel %vm162, %v160, %v157
    %v164 = vadd.f32 %v154, 1.0
    %v165 = vlog2.pop %v164
    %v166 = vmul.f32 %v165, 0.6931472
    %v167 = vmul.f32 -0.5, %v154
    %v168 = vadd.f32 %v167, 1.0
    %v169 = vmul.f32 %v168, %v154
    %v170 = vand.u32 2147483647, %v154
    %vm171 = vcmp.lt.f32.partialorder %v170, 0.0004427343
    %v172 = vsel %vm171, %v169, %v166
    %v173 = vmax.f32 %v142, 0.0
    %v174 = vmax.f32 %v145, 0.0
    %v175 = vadd.f32 %v173, %v163
    %v176 = vadd.f32 %v174, %v172
    %177 = vset.pattern.permute.xlu0 20
    %178 = vperm.xlu0 %177, %v43
    %v179 = vpop.permute.xlu0 %178
    %181 = vset.pattern.permute.xlu0 20
    %182 = vperm.xlu0 %181, %v44
    %v183 = vpop.permute.xlu0 %182
    %v185 = vmul.f32 %v179, %v175
    %v186 = vmul.f32 %v183, %v176
    %v187 = vadd.f32 %v185, %v186
    %v188 = vrot.slane %v187, 4
    %v189 = vadd.f32 %v187, %v188
    %v190 = vrot.slane %v189, 2
    %v191 = vadd.f32 %v189, %v190
    %v192 = vrot.slane %v191, 1
    %v193 = vadd.f32 %v191, %v192
    %194 = vset.pattern.permute.xlu0 21
    %195 = vperm.xlu0 %194, %v43
    %v196 = vpop.permute.xlu0 %195
    %v198 = vadd.f32 %v193, %v196
    %199 = vst [vmem:[#allocation7] sm:$0x1] %v198
    // Predicated region
    $region18: #{tpu_custom_call.1} parent=1 // pred_check
      _
    $region19: #{tpu_custom_call.1} parent=1 // pred_check_branch
      %201 = sbr.rel (0) target = $region21
    $region20: #{tpu_custom_call.1} parent=1 // pred_region
      %203 = vsyncadd [#allocation4], 0
      %s205 = sshll.u32 [#allocation7], 4
      %s206 = int_to_ptr.vmem [resolvable:$true] %s205
      %s207 = sshll.u32 %s2, 4
      %s208 = int_to_ptr.hbm [resolvable:$true] %s207
      %210 = dma.vmem_to_hbm [thread:$0]  %s206, 16, %s208, [#allocation4]
    $region21: #{tpu_custom_call.1} parent=1 // pred_fallthru
      _
    // Predicated region
    $region22: #{tpu_custom_call.1} parent=1 // pred_check
      _
    $region23: #{tpu_custom_call.1} parent=1 // pred_check_branch
      %212 = sbr.rel (0) target = $region25
    $region24: #{tpu_custom_call.1} parent=1 // pred_region
      %214 = dma.done [#allocation4], 16
    $region25: #{tpu_custom_call.1} parent=1 // pred_fallthru
      _
    %215 = vsyncpa [#allocation3], 1
    %216 = vsyncpa [#allocation6], 1
    %217 = vsyncpa [#allocation4], 1

</llo_original>
